<compile_context>
chip_gen: v6e
topology: v6e:2x2x1
jax: 0.10.0
libtpu: 0.0.40
codegen_flags: <defaults>
</compile_context>

<pallas_src>
import functools

import jax
import jax.numpy as jnp
from jax.experimental import pallas as pl
from jax.experimental.pallas import tpu as pltpu

_HALF_LOG_2PI = 0.5 * float(jnp.log(2.0 * jnp.pi))


# --------------------------------------------------------------------------
# Generation detection / budgets
# --------------------------------------------------------------------------
@functools.lru_cache(maxsize=1)
def _vmem_capacity_bytes():
    try:
        info = pltpu.get_tpu_info()
        v = int(getattr(info, "vmem_capacity_bytes", 0))
        if v > 0:
            return v
    except Exception:
        pass
    try:
        kind = jax.devices()[0].device_kind.lower()
        if "v7" in kind:
            return 64 * 1024 * 1024
        return 128 * 1024 * 1024
    except Exception:
        return 64 * 1024 * 1024  # conservative default (v7x-safe)


def _generation_budgets():
    """Returns (working_set_budget_bytes, scoped_vmem_limit_bytes)."""
    vmem = _vmem_capacity_bytes()
    if vmem >= 96 * 1024 * 1024:
        # v5e / v6e class: 128 MiB physical VMEM -> big blocks, high limit.
        return 72 * 1024 * 1024, 96 * 1024 * 1024
    # v7x class: 64 MiB VMEM per TC -> keep headroom for compiler scratch.
    return 40 * 1024 * 1024, 56 * 1024 * 1024


def _sublane_pack(dtype):
    # f32 -> 8 rows/vreg, bf16 -> 16, int8/fp8 -> 32.
    return max(8, 32 // jnp.dtype(dtype).itemsize)


def _pick_batch_tile(B, row_width, in_itemsize, out_width, pack, working_budget):
    """Rows per block for a (B, row_width) kernel input, byte-budgeted."""
    # Per-row VMEM footprint: double-buffered native-dtype input block,
    # f32 temporaries for the upcast/compute, double-buffered f32 output block.
    per_row = row_width * in_itemsize * 2 + row_width * 4 * 2 + out_width * 4 * 2
    tb = max(pack, working_budget // max(per_row, 1))
    tb = max(pack, (tb // pack) * pack)
    if B > tb:
        return tb
    # Whole batch fits in one block: still split into >=2 grid steps when the
    # input is big enough to matter, so both v7x TensorCores get work.
    if B >= 2 * pack and B * row_width * in_itemsize >= (1 << 20):
        half = -(-((B + 1) // 2) // pack) * pack  # ceil(B/2) rounded up to pack
        if half < B:
            return half
    return B  # full-extent block is always a legal block shape


# --------------------------------------------------------------------------
# Kernels
# --------------------------------------------------------------------------
def _logprob_kernel(x_ref, params_ref, c_ref, out_ref):
    # x_ref: (TB, D) native dtype; params_ref: (2, D) f32 = [mean; -0.5/var];
    # c_ref: (1,) f32 in SMEM.
    x = x_ref[...].astype(jnp.float32)            # upcast in-kernel
    diff = x - params_ref[0:1, :]
    per_dim = diff * diff * params_ref[1:2, :]    # -0.5 * ((x-mu)/std)^2
    # Independent(..., 1): sum over event dim D (XLU cross-lane reduce).
    out_ref[...] = jnp.sum(per_dim, axis=-1, keepdims=True) + c_ref[0]


def _logprob_packed_kernel(x_ref, params_ref, sel_ref, c_ref, out_ref):
    # Lane-packed: x_ref (TB, k*D); params tiled to (2, k*D); sel (k*D, k) 0/1.
    x = x_ref[...].astype(jnp.float32)
    diff = x - params_ref[0:1, :]
    per_dim = diff * diff * params_ref[1:2, :]
    # Segmented sum over each D-chunk via a selector matmul on the idle MXU.
    out_ref[...] = jnp.dot(per_dim, sel_ref[...],
                           preferred_element_type=jnp.float32) + c_ref[0]


# --------------------------------------------------------------------------
# Wrapper
# --------------------------------------------------------------------------
@jax.jit
def gaussian_log_prob(x, mean, std):
    """x: (B, D) any float dtype; mean/std: (D,) -> (B,) f32 log-probs."""
    B, D = x.shape
    in_itemsize = jnp.dtype(x.dtype).itemsize
    pack = _sublane_pack(x.dtype)
    working_budget, vmem_limit = _generation_budgets()

    # Hoist distribution constants out of the kernel (fixed parameters).
    mean_f = mean.astype(jnp.float32)
    std_f = std.astype(jnp.float32)
    nhiv = -0.5 / (std_f * std_f)                                  # -0.5 / var
    c = (-jnp.sum(jnp.log(std_f)) - D * _HALF_LOG_2PI).reshape(1)  # normalizer

    cparams = pltpu.CompilerParams(
        dimension_semantics=("parallel",),
        vmem_limit_bytes=int(vmem_limit),
    )

    # Lane packing factor for small D.
    k = 128 // D if (D < 128 and 128 % D == 0) else 1
    if k > 1 and B % k != 0:
        # TODO(synk): could split off a <k-row tail instead of falling back to
        # the lane-sparse layout for the whole batch.
        k = 1

    if k > 1:
        Bk, Dp = B // k, k * D
        xk = x.reshape(Bk, Dp)                      # free bitcast for row-major x
        params = jnp.stack([jnp.tile(mean_f, k), jnp.tile(nhiv, k)])     # (2, Dp)
        sel = (jnp.arange(Dp)[:, None] // D
               == jnp.arange(k)[None, :]).astype(jnp.float32)            # (Dp, k)
        TB = _pick_batch_tile(Bk, Dp, in_itemsize, k, pack, working_budget)
        out = pl.pallas_call(
            _logprob_packed_kernel,
            out_shape=jax.ShapeDtypeStruct((Bk, k), jnp.float32),
            grid=(pl.cdiv(Bk, TB),),
            in_specs=[
                pl.BlockSpec((TB, Dp), lambda i: (i, 0)),            # x tiles
                pl.BlockSpec((2, Dp), lambda i: (0, 0)),             # mean / -0.5/var
                pl.BlockSpec((Dp, k), lambda i: (0, 0)),             # selector
                pl.BlockSpec(memory_space=pltpu.MemorySpace.SMEM),   # scalar C
            ],
            out_specs=pl.BlockSpec((TB, k), lambda i: (i, 0)),
            compiler_params=cparams,
        )(xk, params, sel, c)
        return out.reshape(B)

    # Plain (lane-sparse if D < 128) fallback path.
    params = jnp.stack([mean_f, nhiv])                                    # (2, D)
    TB = _pick_batch_tile(B, D, in_itemsize, 1, pack, working_budget)
    out = pl.pallas_call(
        _logprob_kernel,
        out_shape=jax.ShapeDtypeStruct((B, 1), jnp.float32),
        grid=(pl.cdiv(B, TB),),
        in_specs=[
            pl.BlockSpec((TB, D), lambda i: (i, 0)),                 # x tiles
            pl.BlockSpec((2, D), lambda i: (0, 0)),                  # mean / -0.5/var
            pl.BlockSpec(memory_space=pltpu.MemorySpace.SMEM),       # scalar C
        ],
        out_specs=pl.BlockSpec((TB, 1), lambda i: (i, 0)),
        compiler_params=cparams,
    )(x, params, c)
    return out[:, 0]


# --------------------------------------------------------------------------
# Module port
# --------------------------------------------------------------------------
class GaussianBase:
    """JAX/Pallas port of the PyTorch GaussianBase module."""

    def __init__(self, D):
        self.D = D
        # Deterministic parameter init, exactly as in the PyTorch __init__.
        self.mean = jnp.zeros((D,), dtype=jnp.float32)
        self.std = jnp.ones((D,), dtype=jnp.float32)

    def log_prob(self, x):
        assert x.shape[-1] == self.D
        return gaussian_log_prob(x, self.mean, self.std)

    def __call__(self):
        # The PyTorch forward returns a distribution object; here we expose the
        # distribution's hot-path compute (log_prob) backed by the kernel.
        # TODO(synk): sampling (rsample) is host-side RNG glue, not kernelized.
        return self


def _reference_log_prob(x, mean, std):
    x = x.astype(jnp.float32)
    z = (x - mean[None, :]) / std[None, :]
    per_dim = -0.5 * z * z - jnp.log(std)[None, :] - _HALF_LOG_2PI
    return jnp.sum(per_dim, axis=-1)


if __name__ == "__main__":
    key = jax.random.PRNGKey(0)
    D = 32
    base = GaussianBase(D)
    dist = base()                       # analogous to module.forward()

    k1, k2, k3 = jax.random.split(key, 3)

    # Lane-packed path (k = 128 // 32 = 4), single full-extent block.
    x_small = jax.random.normal(k1, (8, D), dtype=jnp.float32)
    lp_small = jax.block_until_ready(dist.log_prob(x_small))
    ref_small = _reference_log_prob(x_small, base.mean, base.std)
    assert lp_small.shape == (8,)
    assert jnp.allclose(lp_small, ref_small, atol=1e-4, rtol=1e-5), (lp_small, ref_small)

    # Lane-packed path, larger batch.
    x_big = jax.random.normal(k2, (2500, D), dtype=jnp.float32)
    lp_big = jax.block_until_ready(dist.log_prob(x_big))
    ref_big = _reference_log_prob(x_big, base.mean, base.std)
    assert lp_big.shape == (2500,)
    assert jnp.allclose(lp_big, ref_big, atol=1e-4, rtol=1e-5)

    # Lane-sparse fallback path: B not divisible by the packing factor.
    x_odd = jax.random.normal(k3, (9, D), dtype=jnp.float32)
    lp_odd = jax.block_until_ready(dist.log_prob(x_odd))
    ref_odd = _reference_log_prob(x_odd, base.mean, base.std)
    assert lp_odd.shape == (9,)
    assert jnp.allclose(lp_odd, ref_odd, atol=1e-4, rtol=1e-5)

    print("KERNEL_OK")
</pallas_src>

<mosaic_0001>
module attributes {stable_mosaic.version = 11 : i64} {
  func.func @_logprob_packed_kernel(%arg0: i32, %arg1: memref<2x128xf32, #tpu.memory_space<vmem>>, %arg2: memref<2x128xf32, #tpu.memory_space<vmem>>, %arg3: memref<128x4xf32, #tpu.memory_space<vmem>>, %arg4: memref<1xf32, #tpu.memory_space<smem>>, %arg5: memref<2x4xf32, #tpu.memory_space<vmem>>) attributes {dimension_semantics = [#tpu.dimension_semantics<parallel>], iteration_bounds = array<i64: 1>, scalar_prefetch = 0 : i64, scratch_operands = 0 : i64, tpu.core_type = #tpu.core_type<tc>, window_params = [{transform_indices = @transform_0, window_bounds = array<i64: 2, 128>}, {pipeline_mode = #tpu.pipeline_mode<synchronous>, transform_indices = @transform_1, window_bounds = array<i64: 2, 128>}, {pipeline_mode = #tpu.pipeline_mode<synchronous>, transform_indices = @transform_2, window_bounds = array<i64: 128, 4>}, {transform_indices = @transform_3, window_bounds = array<i64: 1>}, {transform_indices = @transform_4, window_bounds = array<i64: 2, 4>}]} {
    %c0 = arith.constant 0 : index
    %c0_0 = arith.constant 0 : index
    %0 = vector.load %arg1[%c0, %c0_0] : memref<2x128xf32, #tpu.memory_space<vmem>>, vector<2x128xf32>
    %c0_1 = arith.constant 0 : index
    %c0_2 = arith.constant 0 : index
    %1 = vector.load %arg2[%c0_1, %c0_2] : memref<2x128xf32, #tpu.memory_space<vmem>>, vector<1x128xf32>
    %2 = vector.broadcast %1 : vector<1x128xf32> to vector<2x128xf32>
    %3 = arith.subf %0, %2 : vector<2x128xf32>
    %4 = arith.mulf %3, %3 : vector<2x128xf32>
    %c1 = arith.constant 1 : index
    %c0_3 = arith.constant 0 : index
    %5 = vector.load %arg2[%c1, %c0_3] : memref<2x128xf32, #tpu.memory_space<vmem>>, vector<1x128xf32>
    %6 = vector.broadcast %5 : vector<1x128xf32> to vector<2x128xf32>
    %7 = arith.mulf %4, %6 : vector<2x128xf32>
    %c0_4 = arith.constant 0 : index
    %c0_5 = arith.constant 0 : index
    %8 = vector.load %arg3[%c0_4, %c0_5] : memref<128x4xf32, #tpu.memory_space<vmem>>, vector<128x4xf32>
    %cst = arith.constant dense<0.000000e+00> : vector<2x4xf32>
    %9 = tpu.matmul %7, %8, %cst {dimension_numbers = #tpu.dot_dimension_numbers<[1], [0], [0], [1], [0, 0, 1, 1], [], []>} : vector<2x128xf32>, vector<128x4xf32>, vector<2x4xf32> -> vector<2x4xf32>
    %c0_6 = arith.constant 0 : index
    %10 = memref.load %arg4[%c0_6] : memref<1xf32, #tpu.memory_space<smem>>
    %11 = vector.broadcast %10 : f32 to vector<2x4xf32>
    %12 = arith.addf %9, %11 : vector<2x4xf32>
    %c0_7 = arith.constant 0 : index
    %c0_8 = arith.constant 0 : index
    %13 = vector.load %arg5[%c0_7, %c0_8] : memref<2x4xf32, #tpu.memory_space<vmem>>, vector<2x4xf32>
    tpu.vector_store %arg5[%c0_7, %c0_8], %12 {strides = array<i32>} : memref<2x4xf32, #tpu.memory_space<vmem>>, vector<2x4xf32>,
    return
  }
  func.func @transform_0(%arg0: i32) -> (i32, i32) {
    %c0_i32 = arith.constant 0 : i32
    %c0_i32_0 = arith.constant 0 : i32
    return %arg0, %c0_i32 : i32, i32
  }
  func.func @transform_1(%arg0: i32) -> (i32, i32) {
    %c0_i32 = arith.constant 0 : i32
    %c0_i32_0 = arith.constant 0 : i32
    %c0_i32_1 = arith.constant 0 : i32
    return %c0_i32, %c0_i32_0 : i32, i32
  }
  func.func @transform_2(%arg0: i32) -> (i32, i32) {
    %c0_i32 = arith.constant 0 : i32
    %c0_i32_0 = arith.constant 0 : i32
    %c0_i32_1 = arith.constant 0 : i32
    return %c0_i32, %c0_i32_0 : i32, i32
  }
  func.func @transform_3(%arg0: i32) -> i32 {
    %c0_i32 = arith.constant 0 : i32
    %c0_i32_0 = arith.constant 0 : i32
    return %c0_i32 : i32
  }
  func.func @transform_4(%arg0: i32) -> (i32, i32) {
    %c0_i32 = arith.constant 0 : i32
    %c0_i32_0 = arith.constant 0 : i32
    return %arg0, %c0_i32 : i32, i32
  }
}

</mosaic_0001>

<llo_original>
// kernel: tile.17
$region0: #{tile.17}
  #allocation0 [shape = 's32[1]{0}', space=sflag, size = 0x4, scoped, tag = 'scoped memory for tile.17']
  %s0 = inlined_call_operand.vmem [shape: f32[32], index: 0, kind: input, shape index: {}]
  %s1 = inlined_call_operand.vmem [shape: f32[4,32], index: 1, kind: output, shape index: {}]
  // Predicated region
  $region2: #{tile.17} parent=0 // pred_check
    _
  $region3: #{tile.17} parent=0 // pred_check_branch
    %3 = sbr.rel (0) target = $region5
  $region4: #{tile.17} parent=0 // pred_region
    _
  $region5: #{tile.17} parent=0 // pred_fallthru
    _
  %v4 = vld [vmem:[%s0] ss:$0 sm:$0xff]
  %5 = vst [vmem:[%s1] sm:$0xf] %v4

// kernel: tile.19
$region0: #{tile.19}
  %s0 = inlined_call_operand.vmem [shape: f32[4,32], index: 0, kind: input, shape index: {}]
  %s1 = inlined_call_operand.vmem [shape: f32[1,128], index: 1, kind: output, shape index: {}]
  $region1: #{tile.19} parent=0
    #allocation0 [shape = 'u8[4096]{0}', space=vmem, size = 0x1000, scoped, tag = 'scoped mem for output reshape']
    #allocation1 [shape = 'u8[4096]{0}', space=vmem, size = 0x1000, scoped, tag = 'scoped mem for input reshape']
    %s3 = sshll.u32 1, 4
    %s4 = ssub.s32 %s3, 1
    %v5 = vld [vmem:[%s0] sm:%s4]
    %6 = vst [vmem:[#allocation1] sm:%s4] %v5
    %v7 = vld [vmem:[#allocation1] sm:$0x1]
    %vm8 = vcmask 261120
    %9 = vst.msk [vmem:[#allocation0] sm:$0x1] %vm8, %v7
    %s10 = scalar_lea.vmem [#allocation1], 3
    %v11 = vld [vmem:[%s10] sm:$0x1]
    %12 = vrot.lane.b32.xlu0 %v11, 96
    %v13 = vpop.permute.xlu0 %12
    %vm14 = vcmask 1048320
    %15 = vst.msk [vmem:[#allocation0] sm:$0x1] %vm14, %v13
    %s16 = scalar_lea.vmem [#allocation1], 2
    %v17 = vld [vmem:[%s16] sm:$0x1]
    %18 = vrot.lane.b32.xlu0 %v17, 64
    %v19 = vpop.permute.xlu0 %18
    %vm20 = vcmask 785920
    %21 = vst.msk [vmem:[#allocation0] sm:$0x1] %vm20, %v19
    %s22 = scalar_lea.vmem [#allocation1], 1
    %v23 = vld [vmem:[%s22] sm:$0x1]
    %24 = vrot.lane.b32.xlu0 %v23, 32
    %v25 = vpop.permute.xlu0 %24
    %vm26 = vcmask 523520
    %27 = vst.msk [vmem:[#allocation0] sm:$0x1] %vm26, %v25
    %s29 = sshll.u32 1, 1
    %s30 = ssub.s32 %s29, 1
    %v32 = vld [vmem:[#allocation0] sm:%s30]
    %s33 = sshll.u32 1, 1
    %s34 = ssub.s32 %s33, 1
    %35 = vst [vmem:[%s1] sm:%s34] %v32

// kernel: gaussian_log_prob.1
$region0: #{gaussian_log_prob.1}
  #allocation0 [shape = 'u32[]', space=smem, size = 0x4, offset = 0x4, fixed_abs, tag = 'smem constant byte address 0x4 - core index']
  #allocation1 [shape = 'u32[144,128]{1,0:T(1,128)}', space=vmem, size = 0x12000, scoped, tag = 'internal scratch']
  #allocation2 [shape = 'f32[1]{0:T(128)S(6)}', space=smem, size = 0x200, scoped, tag = 'scoped memory for gaussian_log_prob.1']
  %s0 = inlined_call_operand.vmem [shape: f32[2,128], index: 0, kind: input, shape index: {}]
  %s1 = inlined_call_operand.vmem [shape: f32[2,128], index: 1, kind: input, shape index: {}]
  %s2 = inlined_call_operand.vmem [shape: f32[128,4], index: 2, kind: input, shape index: {}]
  %s3 = inlined_call_operand.<no memory space> [shape: f32[1], index: 3, kind: input, shape index: {}]
  %s4 = inlined_call_operand.vmem [shape: f32[2,4], index: 4, kind: output, shape index: {}]
  %s5 = sld [smem:[#allocation0]]
  $region26: #{gaussian_log_prob.1} parent=0
    _
  %s7 = ssub.s32 1, %s5
  %s8 = scalar_select 0, %s7, %s5
  %9 = sst [smem:[#allocation2]] %s3
  // Predicated region
  $region2: #{gaussian_log_prob.1} parent=0 // pred_check
    _
  $region3: #{gaussian_log_prob.1} parent=0 // pred_check_branch
    %11 = sbr.rel (0) target = $region5
  $region4: #{gaussian_log_prob.1} parent=0 // pred_region
    _
  $region5: #{gaussian_log_prob.1} parent=0 // pred_fallthru
    _
  // Predicated region
  $region6: #{gaussian_log_prob.1} parent=0 // pred_check
    _
  $region7: #{gaussian_log_prob.1} parent=0 // pred_check_branch
    %13 = sbr.rel (0) target = $region9
  $region8: #{gaussian_log_prob.1} parent=0 // pred_region
    _
  $region9: #{gaussian_log_prob.1} parent=0 // pred_fallthru
    _
  // Predicated region
  $region10: #{gaussian_log_prob.1} parent=0 // pred_check
    _
  $region11: #{gaussian_log_prob.1} parent=0 // pred_check_branch
    %15 = sbr.rel (0) target = $region13
  $region12: #{gaussian_log_prob.1} parent=0 // pred_region
    _
  $region13: #{gaussian_log_prob.1} parent=0 // pred_fallthru
    _
  // Predicated region
  $region14: #{gaussian_log_prob.1} parent=0 // pred_check
    _
  $region15: #{gaussian_log_prob.1} parent=0 // pred_check_branch
    %17 = sbr.rel (0) target = $region17
  $region16: #{gaussian_log_prob.1} parent=0 // pred_region
    _
  $region17: #{gaussian_log_prob.1} parent=0 // pred_fallthru
    _
  %v18 = vld [vmem:[%s0] sm:$0x3]
  %v19 = vld [vmem:[%s1] sm:$0x1]
  %v20 = vlaneseq
  %v21 = vshrl.u32 %v20, 7
  %v22 = vsub.s32 0, %v21
  %v23 = vrot.slane %v19, %v22
  %v24 = vsub.f32 %v18, %v23
  %v25 = vmul.f32 %v24, %v24
  %v26 = vld [vmem:[%s1 + $0x1] sm:$0x1]
  %v27 = vlaneseq
  %v28 = vshrl.u32 %v27, 7
  %v29 = vsub.s32 0, %v28
  %v30 = vrot.slane %v26, %v29
  %v31 = vmul.f32 %v25, %v30
  %v32 = vld [vmem:[%s2] sm:$0xff]
  %v33 = vld [vmem:[%s2 + $0x8] sm:$0xff]
  %v34 = vld [vmem:[%s2 + $0x10] sm:$0xff]
  %v35 = vld [vmem:[%s2 + $0x18] sm:$0xff]
  %v36 = vld [vmem:[%s2 + $0x20] sm:$0xff]
  %v37 = vld [vmem:[%s2 + $0x28] sm:$0xff]
  %v38 = vld [vmem:[%s2 + $0x30] sm:$0xff]
  %v39 = vld [vmem:[%s2 + $0x38] sm:$0xff]
  %v40 = vld [vmem:[%s2 + $0x40] sm:$0xff]
  %v41 = vld [vmem:[%s2 + $0x48] sm:$0xff]
  %v42 = vld [vmem:[%s2 + $0x50] sm:$0xff]
  %v43 = vld [vmem:[%s2 + $0x58] sm:$0xff]
  %v44 = vld [vmem:[%s2 + $0x60] sm:$0xff]
  %v45 = vld [vmem:[%s2 + $0x68] sm:$0xff]
  %v46 = vld [vmem:[%s2 + $0x70] sm:$0xff]
  %v47 = vld [vmem:[%s2 + $0x78] sm:$0xff]
  %s48 = sld [smem:[#allocation2]]
  %v49 = vstv %s48
  %50 = vmatprep.subr.mxu0 0.0
  %51 = vmatpush1.msra.mxu0 %v47
  %52 = vmatprep.subr.mxu0 0.0
  %53 = vmatpush1.msra.mxu0 %v46
  %54 = vmatprep.subr.mxu0 0.0
  %55 = vmatpush1.msra.mxu0 %v45
  %56 = vmatprep.subr.mxu0 0.0
  %57 = vmatpush1.msra.mxu0 %v44
  %58 = vmatprep.subr.mxu0 0.0
  %59 = vmatpush1.msra.mxu0 %v43
  %60 = vmatprep.subr.mxu0 0.0
  %61 = vmatpush1.msra.mxu0 %v42
  %62 = vmatprep.subr.mxu0 0.0
  %63 = vmatpush1.msra.mxu0 %v41
  %64 = vmatprep.subr.mxu0 0.0
  %65 = vmatpush1.msra.mxu0 %v40
  %66 = vmatprep.subr.mxu0 0.0
  %67 = vmatpush1.msra.mxu0 %v39
  %68 = vmatprep.subr.mxu0 0.0
  %69 = vmatpush1.msra.mxu0 %v38
  %70 = vmatprep.subr.mxu0 0.0
  %71 = vmatpush1.msra.mxu0 %v37
  %72 = vmatprep.subr.mxu0 0.0
  %73 = vmatpush1.msra.mxu0 %v36
  %74 = vmatprep.subr.mxu0 0.0
  %75 = vmatpush1.msra.mxu0 %v35
  %76 = vmatprep.subr.mxu0 0.0
  %77 = vmatpush1.msra.mxu0 %v34
  %78 = vmatprep.subr.mxu0 0.0
  %79 = vmatpush1.msra.mxu0 %v33
  %80 = vmatprep.subr.mxu0 0.0
  %81 = vmatpush1.msra.mxu0 %v32
  %82 = vmatprep.subr.mxu0 0.0
  %83 = vmatpush2.msra.mxu0 0.0
  %84 = vmatprep.subr.mxu0 0.0
  %85 = vmatpush2.msra.mxu0 0.0
  %86 = vmatprep.subr.mxu0 0.0
  %87 = vmatpush2.msra.mxu0 0.0
  %88 = vmatprep.subr.mxu0 0.0
  %89 = vmatpush2.msra.mxu0 0.0
  %90 = vmatprep.subr.mxu0 0.0
  %91 = vmatpush2.msra.mxu0 0.0
  %92 = vmatprep.subr.mxu0 0.0
  %93 = vmatpush2.msra.mxu0 0.0
  %94 = vmatprep.subr.mxu0 0.0
  %95 = vmatpush2.msra.mxu0 0.0
  %96 = vmatprep.subr.mxu0 0.0
  %97 = vmatpush2.msra.mxu0 0.0
  %98 = vmatprep.subr.mxu0 0.0
  %99 = vmatpush2.msra.mxu0 0.0
  %100 = vmatprep.subr.mxu0 0.0
  %101 = vmatpush2.msra.mxu0 0.0
  %102 = vmatprep.subr.mxu0 0.0
  %103 = vmatpush2.msra.mxu0 0.0
  %104 = vmatprep.subr.mxu0 0.0
  %105 = vmatpush2.msra.mxu0 0.0
  %106 = vmatprep.subr.mxu0 0.0
  %107 = vmatpush2.msra.mxu0 0.0
  %108 = vmatprep.subr.mxu0 0.0
  %109 = vmatpush2.msra.mxu0 0.0
  %110 = vmatprep.subr.mxu0 0.0
  %111 = vmatpush2.msra.mxu0 0.0
  %112 = vmatprep.subr.mxu0 0.0
  %113 = vmatpush2.msra.mxu0 0.0
  %114 = vmatprep.mubr.f32.mxu0 0.0
  %115 = vmatmul.mubr.f32.gmra.mxu0 %v31
  %v116 = vpop.f32.mrf.mxu0
  %v117 = vadd.f32 %v49, %v116
  %v118 = vpop.f32.mrf.mxu0
  %119 = vdwg.mxu0
  %vm120 = vcmask 25600
  %121 = vst.msk [vmem:[%s4] sm:$0x3] %vm120, %v117
  // Predicated region
  $region18: #{gaussian_log_prob.1} parent=0 // pred_check
    _
  $region19: #{gaussian_log_prob.1} parent=0 // pred_check_branch
    %123 = sbr.rel (0) target = $region21
  $region20: #{gaussian_log_prob.1} parent=0 // pred_region
    _
  $region21: #{gaussian_log_prob.1} parent=0 // pred_fallthru
    _
  // Predicated region
  $region22: #{gaussian_log_prob.1} parent=0 // pred_check
    _
  $region23: #{gaussian_log_prob.1} parent=0 // pred_check_branch
    %125 = sbr.rel (0) target = $region25
  $region24: #{gaussian_log_prob.1} parent=0 // pred_region
    _
  $region25: #{gaussian_log_prob.1} parent=0 // pred_fallthru
    _

</llo_original>
